<compile_context>
chip_gen: v7x
topology: tpu7x:2x2x1
jax: 0.10.0
libtpu: 0.0.40
codegen_flags: <defaults>
</compile_context>

<pallas_src>
import math

import jax
import jax.numpy as jnp
from jax.experimental import pallas as pl
from jax.experimental.pallas import tpu as pltpu


def _round_up(x, m):
    return ((x + m - 1) // m) * m


def _make_kernel(k):
    """Kernel for lane-packing factor k."""
    if k == 1:
        # E is already a multiple of 128: lane-dense without packing.
        def kernel(dist_ref, neg_a_ref, out_ref):
            d = dist_ref[...]                      # (tr, 1)   f32
            na = neg_a_ref[...]                    # (1, E)    f32  (= -a)
            out_ref[...] = jnp.exp(d * na).astype(out_ref.dtype)
        return kernel

    def kernel(dist_ref, sel_ref, neg_a_ref, out_ref):
        d = dist_ref[...]                          # (tr, k)        f32
        sel = sel_ref[...]                         # (k, k*E)       f32 0/1
        na = neg_a_ref[...]                        # (1, k*E)       f32 (= -a tiled)
        # Lane expansion on the MXU: d_exp[:, c] = d[:, c // E].  Exact in f32
        # (each lane is one d_j * 1.0 plus zeros).
        d_exp = jnp.dot(d, sel, preferred_element_type=jnp.float32)
        out_ref[...] = jnp.exp(d_exp * na).astype(out_ref.dtype)

    return kernel


def monotonically_decreasing_rpe(distance_matrix, a, *,
                                 out_dtype=jnp.float32,
                                 target_tile_bytes=1 << 20):
    """distance_matrix: (N, N), a: (E,) -> (N, N, E) with out[i,j,d]=exp(-dm[i,j]*a[d])."""
    n = distance_matrix.shape[0]
    e = a.shape[0]
    rows = n * n
    out_bytes = jnp.dtype(out_dtype).itemsize

    # Lane-packing factor: lane width lcm(E, 128) is always a multiple of 128.
    k = 128 // math.gcd(e, 128)
    lane_w = k * e
    packed_rows = pl.cdiv(rows, k)

    # --- tile-count-first tiling -------------------------------------------
    # Per packed row in VMEM (double-buffered): output row (lane_w*out_bytes)
    # + distance row lane-padded to 128 f32 lanes.
    per_row_bytes = lane_w * out_bytes + 128 * 4
    tr_max = max(16, (target_tile_bytes // per_row_bytes) // 16 * 16)
    ntiles = pl.cdiv(packed_rows, tr_max)
    if packed_rows >= 16 * 8:
        ntiles = max(ntiles, 8)        # pipeline fill + 2-TC balance on v7x
    elif packed_rows >= 32:
        ntiles = max(ntiles, 2)
    if ntiles > 1 and ntiles % 2 == 1:
        ntiles += 1                    # even step count -> both v7x TCs equal work
    tr = _round_up(pl.cdiv(packed_rows, ntiles), 16)   # 16 sublanes: f32 & bf16 legal
    padded_rows = ntiles * tr          # padding bounded by ~16*ntiles rows

    dist_flat = distance_matrix.reshape(-1).astype(jnp.float32)
    pad = padded_rows * k - rows
    if pad:
        dist_flat = jnp.pad(dist_flat, (0, pad))       # exp(0)=1 in pad, sliced off
    dist_packed = dist_flat.reshape(padded_rows, k)

    # Pre-negate and pre-tile the parameter (O(E) wrapper work).
    neg_a_tiled = jnp.tile(-a.astype(jnp.float32), k).reshape(1, lane_w)

    if k == 1:
        in_arrays = (dist_packed, neg_a_tiled)
        in_specs = [
            pl.BlockSpec((tr, k), lambda i: (i, 0)),          # distances
            pl.BlockSpec((1, lane_w), lambda i: (0, 0)),      # resident -a row
        ]
    else:
        # Constant 0/1 selection matrix: sel[j, c] = 1 iff c // E == j.
        lane_group = jnp.arange(lane_w, dtype=jnp.int32) // e
        sel = (lane_group[None, :] ==
               jnp.arange(k, dtype=jnp.int32)[:, None]).astype(jnp.float32)
        in_arrays = (dist_packed, sel, neg_a_tiled)
        in_specs = [
            pl.BlockSpec((tr, k), lambda i: (i, 0)),          # packed distances
            pl.BlockSpec((k, lane_w), lambda i: (0, 0)),      # resident selection mat
            pl.BlockSpec((1, lane_w), lambda i: (0, 0)),      # resident -a row
        ]

    out_packed = pl.pallas_call(
        _make_kernel(k),
        out_shape=jax.ShapeDtypeStruct((padded_rows, lane_w), out_dtype),
        grid_spec=pltpu.PrefetchScalarGridSpec(
            num_scalar_prefetch=0,
            grid=(ntiles,),
            in_specs=in_specs,
            out_specs=pl.BlockSpec((tr, lane_w), lambda i: (i, 0)),
        ),
        compiler_params=pltpu.CompilerParams(
            dimension_semantics=("parallel",),
            vmem_limit_bytes=32 * 1024 * 1024,
        ),
    )(*in_arrays)

    # Same contiguous buffer: (padded_rows, k*E) -> (padded_rows*k, E).
    out_flat = out_packed.reshape(padded_rows * k, e)
    if pad:
        out_flat = out_flat[:rows]     # only copies when there actually is padding
    return out_flat.reshape(n, n, e)


def _reference(distance_matrix, a):
    # Pure-JAX reference mirroring the PyTorch forward (outer product + exp).
    return jnp.exp(-distance_matrix[:, :, None].astype(jnp.float32)
                   * a[None, None, :].astype(jnp.float32))


if __name__ == "__main__":
    key = jax.random.PRNGKey(0)
    k_dist, k_a, k_a48, k_a128 = jax.random.split(key, 4)

    num_patches = 16
    embed_dim = 32

    # Synthetic distance matrix (non-negative, like pairwise patch distances).
    coords = jax.random.uniform(k_dist, (num_patches, 2), dtype=jnp.float32)
    distance_matrix = jnp.sqrt(
        jnp.sum((coords[:, None, :] - coords[None, :, :]) ** 2, axis=-1)
    )  # (N, N)

    # Deterministic parameter init (torch.randn equivalent).
    a = jax.random.normal(k_a, (embed_dim,), dtype=jnp.float32)

    # f32 output (exact module semantics), MXU-expansion path (E=32 -> k=4).
    out = jax.block_until_ready(monotonically_decreasing_rpe(distance_matrix, a))
    ref = _reference(distance_matrix, a)
    assert out.shape == (num_patches, num_patches, embed_dim)
    assert out.dtype == jnp.float32
    assert jnp.allclose(out, ref, rtol=1e-5, atol=1e-5)

    # bf16 writeback variant (halves HBM output traffic on v5e/v6e); compute f32.
    out_bf16 = jax.block_until_ready(
        monotonically_decreasing_rpe(distance_matrix, a, out_dtype=jnp.bfloat16))
    assert out_bf16.dtype == jnp.bfloat16
    assert jnp.allclose(out_bf16.astype(jnp.float32), ref, rtol=2e-2, atol=2e-2)

    # Odd N regression: exercises the (bounded) padding + slice path.
    dm_odd = distance_matrix[:13, :13]
    out_odd = jax.block_until_ready(monotonically_decreasing_rpe(dm_odd, a))
    assert jnp.allclose(out_odd, _reference(dm_odd, a), rtol=1e-5, atol=1e-5)

    # E not dividing 128 (gcd/lcm packing path): E=48 -> k=8, lane width 384.
    a48 = jax.random.normal(k_a48, (48,), dtype=jnp.float32)
    out48 = jax.block_until_ready(monotonically_decreasing_rpe(distance_matrix, a48))
    assert jnp.allclose(out48, _reference(distance_matrix, a48), rtol=1e-5, atol=1e-5)

    # E multiple of 128 (k=1 fast path, no packing / no matmul).
    a128 = jax.random.normal(k_a128, (128,), dtype=jnp.float32)
    dm8 = distance_matrix[:8, :8]
    out128 = jax.block_until_ready(monotonically_decreasing_rpe(dm8, a128))
    assert jnp.allclose(out128, _reference(dm8, a128), rtol=1e-5, atol=1e-5)

    print("KERNEL_OK")
</pallas_src>

<mosaic_0001>
module attributes {stable_mosaic.version = 11 : i64} {
  func.func @kernel(%arg0: i32, %arg1: memref<32x4xf32, #tpu.memory_space<vmem>>, %arg2: memref<4x128xf32, #tpu.memory_space<vmem>>, %arg3: memref<1x128xf32, #tpu.memory_space<vmem>>, %arg4: memref<32x128xf32, #tpu.memory_space<vmem>>) attributes {dimension_semantics = [#tpu.dimension_semantics<parallel>], iteration_bounds = array<i64: 2>, scalar_prefetch = 0 : i64, scratch_operands = 0 : i64, tpu.core_type = #tpu.core_type<tc>, window_params = [{transform_indices = @transform_0, window_bounds = array<i64: 32, 4>}, {pipeline_mode = #tpu.pipeline_mode<synchronous>, transform_indices = @transform_1, window_bounds = array<i64: 4, 128>}, {pipeline_mode = #tpu.pipeline_mode<synchronous>, transform_indices = @transform_2, window_bounds = array<i64: 1, 128>}, {transform_indices = @transform_3, window_bounds = array<i64: 32, 128>}]} {
    %c0 = arith.constant 0 : index
    %c0_0 = arith.constant 0 : index
    %0 = vector.load %arg1[%c0, %c0_0] : memref<32x4xf32, #tpu.memory_space<vmem>>, vector<32x4xf32>
    %c0_1 = arith.constant 0 : index
    %c0_2 = arith.constant 0 : index
    %1 = vector.load %arg2[%c0_1, %c0_2] : memref<4x128xf32, #tpu.memory_space<vmem>>, vector<4x128xf32>
    %c0_3 = arith.constant 0 : index
    %c0_4 = arith.constant 0 : index
    %2 = vector.load %arg3[%c0_3, %c0_4] : memref<1x128xf32, #tpu.memory_space<vmem>>, vector<1x128xf32>
    %cst = arith.constant dense<0.000000e+00> : vector<32x128xf32>
    %3 = tpu.matmul %0, %1, %cst {dimension_numbers = #tpu.dot_dimension_numbers<[1], [0], [0], [1], [0, 0, 1, 1], [], []>} : vector<32x4xf32>, vector<4x128xf32>, vector<32x128xf32> -> vector<32x128xf32>
    %4 = vector.broadcast %2 : vector<1x128xf32> to vector<32x128xf32>
    %5 = arith.mulf %3, %4 : vector<32x128xf32>
    %6 = math.exp %5 : vector<32x128xf32>
    %c0_5 = arith.constant 0 : index
    %c0_6 = arith.constant 0 : index
    %7 = vector.load %arg4[%c0_5, %c0_6] : memref<32x128xf32, #tpu.memory_space<vmem>>, vector<32x128xf32>
    tpu.vector_store %arg4[%c0_5, %c0_6], %6 {strides = array<i32>} : memref<32x128xf32, #tpu.memory_space<vmem>>, vector<32x128xf32>,
    return
  }
  func.func @transform_0(%arg0: i32) -> (i32, i32) {
    %c0_i32 = arith.constant 0 : i32
    %c0_i32_0 = arith.constant 0 : i32
    return %arg0, %c0_i32 : i32, i32
  }
  func.func @transform_1(%arg0: i32) -> (i32, i32) {
    %c0_i32 = arith.constant 0 : i32
    %c0_i32_0 = arith.constant 0 : i32
    %c0_i32_1 = arith.constant 0 : i32
    return %c0_i32, %c0_i32_0 : i32, i32
  }
  func.func @transform_2(%arg0: i32) -> (i32, i32) {
    %c0_i32 = arith.constant 0 : i32
    %c0_i32_0 = arith.constant 0 : i32
    %c0_i32_1 = arith.constant 0 : i32
    return %c0_i32, %c0_i32_0 : i32, i32
  }
  func.func @transform_3(%arg0: i32) -> (i32, i32) {
    %c0_i32 = arith.constant 0 : i32
    %c0_i32_0 = arith.constant 0 : i32
    return %arg0, %c0_i32 : i32, i32
  }
}

</mosaic_0001>

<llo_original>
// kernel: tpu_custom_call.1
$region0: #{tpu_custom_call.1}
  #allocation0 [shape = 'u32[]', space=smem, size = 0x4, offset = 0x4, fixed_abs, tag = 'smem constant byte address 0x4 - core index']
  #allocation1 [shape = 'u32[144,128]{1,0:T(1,128)}', space=vmem, size = 0x12000, scoped, tag = 'internal scratch']
  %s0 = inlined_call_operand.vmem [shape: f32[64,4], index: 0, kind: input, shape index: {}]
  %s1 = inlined_call_operand.vmem [shape: f32[4,128], index: 1, kind: input, shape index: {}]
  %s2 = inlined_call_operand.vmem [shape: f32[1,128], index: 2, kind: input, shape index: {}]
  %s3 = inlined_call_operand.hbm [shape: f32[64,128], index: 3, kind: output, shape index: {}]
  %s4 = sld [smem:[#allocation0]]
  $region45: #{tpu_custom_call.1} parent=0
    _
  %s6 = ssub.s32 1, %s4
  %s7 = scalar_select 0, %s6, %s4
  $region1: #{tpu_custom_call.1} parent=0
    #allocation2 [shape = 'u8[32768]{0}', space=vmem, size = 0x8000, scoped, tag = 'output window, operand 0']
    #allocation3 [shape = 's32[2]{0}', space=sflag, size = 0x8, scoped, tag = 'scoped memory for tpu_custom_call.1']
    %8 = vsyncpa [#allocation3], 0
    %s9 = scalar_lea.sflag [#allocation3], 1
    %10 = vsyncpa %s9, 0
    loop: start=0, step=1, limit=4
    $region2: #{tpu_custom_call.1} parent=1 // loop_pre_header
      _
    $region3: #{tpu_custom_call.1} parent=1 // loop_header
      %s12 = sphi 0, %s16
      %p13 = scmp.ge.s32.totalorder %s12, 4
      %s22 = sphi 0, %s24
      %s25 = sphi 0, %s22
      %s26 = sphi 0, %s25
      %s42 = sphi 0, %s26
      %s46 = sphi 0, %s46
      %s48 = sphi 0, %s46
      %s49 = sphi 0, %s48
      %s63 = sphi 0, %s49
      %s67 = sphi 0, %s67
      %s69 = sphi 0, %s67
      %s70 = sphi 0, %s69
      %s84 = sphi 0, %s70
      %s90 = sphi 0, %s92
      %s93 = sphi 0, %s90
      %s94 = sphi 0, %s93
      %s110 = sphi 0, %s94
    $region4: #{tpu_custom_call.1} parent=1 // loop_header_branch
      %15 = sbr.rel (%p13) target = $region8
    $region5: #{tpu_custom_call.1} parent=1 // loop_body
      %s17 = ssub.s32 %s12, 1
      %s18 = ssub.s32 %s12, 2
      %s19 = sadd.s32 %s12, 1
      %s20 = ssub.s32 %s12, %s19
      %p21 = scmp.eq.s32.totalorder %s20, 0
      %s23 = sadd.s32 %s22, 1
      %s24 = scalar_select %p21, %s22, %s23
      %p27 = pneg %p21
      %p28 = scmp.eq.s32.totalorder %s12, 1
      %p29 = por %p27, %p28
      %p30 = scmp.ne.s32.totalorder %s22, %s25
      %p31 = scmp.eq.s32.totalorder %s12, 0
      %p32 = por %p30, %p31
      %p33 = scmp.ne.s32.totalorder %s22, %s25
      %p34 = scmp.eq.s32.totalorder %s17, 1
      %p35 = por %p33, %p34
      %p36 = scmp.ne.s32.totalorder %s25, %s26
      %p37 = scmp.eq.s32.totalorder %s17, 0
      %p38 = por %p36, %p37
      %p39 = scmp.ne.s32.totalorder %s25, %s26
      %p40 = scmp.eq.s32.totalorder %s18, 1
      %p41 = por %p39, %p40
      %p43 = scmp.ne.s32.totalorder %s26, %s42
      %p44 = scmp.eq.s32.totalorder %s18, 0
      %p45 = por %p43, %p44
      %s47 = sadd.s32 %s46, 1
      %p50 = scmp.eq.s32.totalorder %s12, 1
      %p51 = scmp.ne.s32.totalorder %s46, %s48
      %p52 = scmp.eq.s32.totalorder %s12, 0
      %p53 = por %p51, %p52
      %p54 = scmp.ne.s32.totalorder %s46, %s48
      %p55 = scmp.eq.s32.totalorder %s17, 1
      %p56 = por %p54, %p55
      %p57 = scmp.ne.s32.totalorder %s48, %s49
      %p58 = scmp.eq.s32.totalorder %s17, 0
      %p59 = por %p57, %p58
      %p60 = scmp.ne.s32.totalorder %s48, %s49
      %p61 = scmp.eq.s32.totalorder %s18, 1
      %p62 = por %p60, %p61
      %p64 = scmp.ne.s32.totalorder %s49, %s63
      %p65 = scmp.eq.s32.totalorder %s18, 0
      %p66 = por %p64, %p65
      %s68 = sadd.s32 %s67, 1
      %p71 = scmp.eq.s32.totalorder %s12, 1
      %p72 = scmp.ne.s32.totalorder %s67, %s69
      %p73 = scmp.eq.s32.totalorder %s12, 0
      %p74 = por %p72, %p73
      %p75 = scmp.ne.s32.totalorder %s67, %s69
      %p76 = scmp.eq.s32.totalorder %s17, 1
      %p77 = por %p75, %p76
      %p78 = scmp.ne.s32.totalorder %s69, %s70
      %p79 = scmp.eq.s32.totalorder %s17, 0
      %p80 = por %p78, %p79
      %p81 = scmp.ne.s32.totalorder %s69, %s70
      %p82 = scmp.eq.s32.totalorder %s18, 1
      %p83 = por %p81, %p82
      %p85 = scmp.ne.s32.totalorder %s70, %s84
      %p86 = scmp.eq.s32.totalorder %s18, 0
      %p87 = por %p85, %p86
      %s88 = ssub.s32 %s12, %s19
      %p89 = scmp.eq.s32.totalorder %s88, 0
      %s91 = sadd.s32 %s90, 1
      %s92 = scalar_select %p89, %s90, %s91
      %p95 = pneg %p89
      %p96 = scmp.eq.s32.totalorder %s12, 1
      %p97 = por %p95, %p96
      %p98 = scmp.ne.s32.totalorder %s90, %s93
      %p99 = scmp.eq.s32.totalorder %s12, 0
      %p100 = por %p98, %p99
      %p101 = scmp.ne.s32.totalorder %s90, %s93
      %p102 = scmp.eq.s32.totalorder %s17, 1
      %p103 = por %p101, %p102
      %p104 = scmp.ne.s32.totalorder %s93, %s94
      %p105 = scmp.eq.s32.totalorder %s17, 0
      %p106 = por %p104, %p105
      %p107 = scmp.ne.s32.totalorder %s93, %s94
      %p108 = scmp.eq.s32.totalorder %s18, 1
      %p109 = por %p107, %p108
      %p111 = scmp.ne.s32.totalorder %s94, %s110
      %p112 = scmp.eq.s32.totalorder %s18, 0
      %p113 = por %p111, %p112
      %p114 = scmp.le.s32.totalorder 1, %s12
      %p115 = scmp.lt.s32.totalorder %s12, 3
      %p116 = pnand %p114, %p115
      %p117 = pneg %p116
      // Predicated region
      $region9: #{tpu_custom_call.1} parent=5 // pred_check
        _
      $region10: #{tpu_custom_call.1} parent=5 // pred_check_branch
        %119 = sbr.rel (%p116) target = $region12
      $region11: #{tpu_custom_call.1} parent=5 // pred_region
        %s120 = ssub.s32 %s12, 1
        // Predicated region
        $region13: #{tpu_custom_call.1} parent=11 // pred_check
          %p121 = pneg %p59
        $region14: #{tpu_custom_call.1} parent=11 // pred_check_branch
          %123 = sbr.rel (%p121) target = $region16
        $region15: #{tpu_custom_call.1} parent=11 // pred_region
          _
        $region16: #{tpu_custom_call.1} parent=11 // pred_fallthru
          _
        // Predicated region
        $region17: #{tpu_custom_call.1} parent=11 // pred_check
          %p124 = pneg %p80
        $region18: #{tpu_custom_call.1} parent=11 // pred_check_branch
          %126 = sbr.rel (%p124) target = $region20
        $region19: #{tpu_custom_call.1} parent=11 // pred_region
          _
        $region20: #{tpu_custom_call.1} parent=11 // pred_fallthru
          _
      $region12: #{tpu_custom_call.1} parent=5 // pred_fallthru
        _
      %p127 = scmp.lt.s32.totalorder %s12, 2
      // Predicated region
      $region21: #{tpu_custom_call.1} parent=5 // pred_check
        %p128 = pneg %p127
      $region22: #{tpu_custom_call.1} parent=5 // pred_check_branch
        %130 = sbr.rel (%p128) target = $region24
      $region23: #{tpu_custom_call.1} parent=5 // pred_region
        // Predicated region
        $region25: #{tpu_custom_call.1} parent=23 // pred_check
          %p131 = pneg %p32
        $region26: #{tpu_custom_call.1} parent=23 // pred_check_branch
          %133 = sbr.rel (%p131) target = $region28
        $region27: #{tpu_custom_call.1} parent=23 // pred_region
          %s134 = smul.u32 4, %s12
          %p135 = scmp.lt.s32.totalorder %s134, 7
          %s136 = scalar_select %p135, %s134, 7
          %s137 = smul.addr %s136, 8
          %s138 = scalar_lea.vmem %s0, %s137
          %s139 = smul.u32 4, %s12
        $region28: #{tpu_custom_call.1} parent=23 // pred_fallthru
          _
      $region24: #{tpu_custom_call.1} parent=5 // pred_fallthru
        _
      %p140 = scmp.le.s32.totalorder 1, %s12
      %p141 = scmp.lt.s32.totalorder %s12, 3
      %p142 = pnand %p140, %p141
      %p143 = pneg %p142
      // Predicated region
      $region29: #{tpu_custom_call.1} parent=5 // pred_check
        _
      $region30: #{tpu_custom_call.1} parent=5 // pred_check_branch
        %145 = sbr.rel (%p142) target = $region32
      $region31: #{tpu_custom_call.1} parent=5 // pred_region
        %s146 = ssub.s32 %s12, 1
        %s147 = smul.u32 4, %s17
        %p148 = scmp.lt.s32.totalorder %s147, 7
        %s149 = scalar_select %p148, %s147, 7
        %s150 = smul.addr %s149, 8
        %s151 = scalar_lea.vmem %s0, %s150
        %p152 = pneg %p38
        %p153 = pneg %p35
        %p154 = pneg %p59
        %p155 = pneg %p56
        %p156 = pneg %p80
        %p157 = pneg %p77
        %p158 = pneg %p106
        %p159 = pneg %p103
        %s160 = sand.u32 %s93, 1
        %s161 = scalar_lea.sflag [#allocation3], %s160
        %s162 = sand.u32 %s93, 1
        %s163 = smul.addr %s162, 32
        %s164 = scalar_lea.vmem [#allocation2], %s163
        %s165 = smul.u32 4, %s17
        %p166 = scmp.lt.s32.totalorder %s165, 7
        %s167 = scalar_select %p166, %s165, 7
        %s168 = smul.addr %s167, 8
        %s169 = scalar_lea.vmem %s0, %s168
        %s170 = smul.u32 4, %s17
        %s171 = smul.u32 4, %s17
        %v172 = vld [vmem:[%s169] sm:$0xff]
        %v173 = vld [vmem:[%s169 + $0x8] sm:$0xff]
        %v174 = vld [vmem:[%s169 + $0x10] sm:$0xff]
        %v175 = vld [vmem:[%s169 + $0x18] sm:$0xff]
        %v176 = vld [vmem:[%s1] sm:$0xf]
        %v177 = vld [vmem:[%s2] sm:$0x1]
        %vm178 = vcmask 31744
        %v180 = vsel %vm178, %v172, 0
        %v183 = vsel %vm178, %v173, 0
        %v186 = vsel %vm178, %v174, 0
        %v189 = vsel %vm178, %v175, 0
        %vm191 = vcmask 1043456
        %v193 = vsel %vm191, %v176, 0
        %195 = vmatprep.subr.mxu0 0.0
        %196 = vmatpush1.msra.mxu0 %v193
        %197 = vmatprep.subr.mxu0 0.0
        %198 = vmatpush1.msra.mxu0 0.0
        %199 = vmatprep.subr.mxu0 0.0
        %200 = vmatpush1.msra.mxu0 0.0
        %201 = vmatprep.subr.mxu0 0.0
        %202 = vmatpush1.msra.mxu0 0.0
        %203 = vmatprep.subr.mxu0 0.0
        %204 = vmatpush1.msra.mxu0 0.0
        %205 = vmatprep.subr.mxu0 0.0
        %206 = vmatpush1.msra.mxu0 0.0
        %207 = vmatprep.subr.mxu0 0.0
        %208 = vmatpush1.msra.mxu0 0.0
        %209 = vmatprep.subr.mxu0 0.0
        %210 = vmatpush1.msra.mxu0 0.0
        %211 = vmatprep.subr.mxu0 0.0
        %212 = vmatpush1.msra.mxu0 0.0
        %213 = vmatprep.subr.mxu0 0.0
        %214 = vmatpush1.msra.mxu0 0.0
        %215 = vmatprep.subr.mxu0 0.0
        %216 = vmatpush1.msra.mxu0 0.0
        %217 = vmatprep.subr.mxu0 0.0
        %218 = vmatpush1.msra.mxu0 0.0
        %219 = vmatprep.subr.mxu0 0.0
        %220 = vmatpush1.msra.mxu0 0.0
        %221 = vmatprep.subr.mxu0 0.0
        %222 = vmatpush1.msra.mxu0 0.0
        %223 = vmatprep.subr.mxu0 0.0
        %224 = vmatpush1.msra.mxu0 0.0
        %225 = vmatprep.subr.mxu0 0.0
        %226 = vmatpush1.msra.mxu0 0.0
        %227 = vmatprep.subr.mxu0 0.0
        %228 = vmatpush1.msra.mxu0 0.0
        %229 = vmatprep.subr.mxu0 0.0
        %230 = vmatpush1.msra.mxu0 0.0
        %231 = vmatprep.subr.mxu0 0.0
        %232 = vmatpush1.msra.mxu0 0.0
        %233 = vmatprep.subr.mxu0 0.0
        %234 = vmatpush1.msra.mxu0 0.0
        %235 = vmatprep.subr.mxu0 0.0
        %236 = vmatpush1.msra.mxu0 0.0
        %237 = vmatprep.subr.mxu0 0.0
        %238 = vmatpush1.msra.mxu0 0.0
        %239 = vmatprep.subr.mxu0 0.0
        %240 = vmatpush1.msra.mxu0 0.0
        %241 = vmatprep.subr.mxu0 0.0
        %242 = vmatpush1.msra.mxu0 0.0
        %243 = vmatprep.subr.mxu0 0.0
        %244 = vmatpush1.msra.mxu0 0.0
        %245 = vmatprep.subr.mxu0 0.0
        %246 = vmatpush1.msra.mxu0 0.0
        %247 = vmatprep.subr.mxu0 0.0
        %248 = vmatpush1.msra.mxu0 0.0
        %249 = vmatprep.subr.mxu0 0.0
        %250 = vmatpush1.msra.mxu0 0.0
        %251 = vmatprep.subr.mxu0 0.0
        %252 = vmatpush1.msra.mxu0 0.0
        %253 = vmatprep.subr.mxu0 0.0
        %254 = vmatpush1.msra.mxu0 0.0
        %255 = vmatprep.subr.mxu0 0.0
        %256 = vmatpush1.msra.mxu0 0.0
        %257 = vmatprep.subr.mxu0 0.0
        %258 = vmatpush1.msra.mxu0 0.0
        %259 = vmatprep.mubr.f32.mxu0 0.0
        %260 = vmatmul.mubr.f32.gmra.mrb[0].mxu0 %v180
        %v261 = vpop.f32.mrb[0].mxu0
        %v262 = vadd.f32 0.0, %v261
        %v263 = vpop.f32.mrb[0].mxu0
        %264 = vmatprep.mubr.f32.mxu0 0.0
        %265 = vmatmul.mubr.f32.gmra.mrb[0].mxu0 %v183
        %v266 = vpop.f32.mrb[0].mxu0
        %v267 = vadd.f32 0.0, %v266
        %v268 = vpop.f32.mrb[0].mxu0
        %269 = vmatprep.mubr.f32.mxu0 0.0
        %270 = vmatmul.mubr.f32.gmra.mrb[0].mxu0 %v186
        %v271 = vpop.f32.mrb[0].mxu0
        %v272 = vadd.f32 0.0, %v271
        %v273 = vpop.f32.mrb[0].mxu0
        %274 = vmatprep.mubr.f32.mxu0 0.0
        %275 = vmatmul.mubr.f32.gmra.mrb[0].mxu0 %v189
        %v276 = vpop.f32.mrb[0].mxu0
        %v277 = vadd.f32 0.0, %v276
        %v278 = vpop.f32.mrb[0].mxu0
        %279 = vdwg.mxu0
        %v281 = vlaneseq
        %v282 = vshrl.u32 %v281, 7
        %v283 = vsub.s32 0, %v282
        %v284 = vrot.slane %v177, %v283
        %v286 = vmul.f32 %v262, %v284
        %v287 = vmul.f32 %v267, %v284
        %v288 = vmul.f32 %v272, %v284
        %v289 = vmul.f32 %v277, %v284
        %v290 = vmul.f32 %v286, 1.442695
        %v291 = vpow.pop %v290
        %v292 = vmul.f32 %v287, 1.442695
        %v293 = vpow.pop %v292
        %v294 = vmul.f32 %v288, 1.442695
        %v295 = vpow.pop %v294
        %v296 = vmul.f32 %v289, 1.442695
        %v297 = vpow.pop %v296
        %298 = vst [vmem:[%s164] sm:$0xff] %v291
        %299 = vst [vmem:[%s164 + $0x8] sm:$0xff] %v293
        %300 = vst [vmem:[%s164 + $0x10] sm:$0xff] %v295
        %301 = vst [vmem:[%s164 + $0x18] sm:$0xff] %v297
        %s302 = sand.u32 %s93, 1
        %s303 = scalar_lea.sflag [#allocation3], %s302
        %s304 = sand.u32 %s93, 1
        %s305 = smul.addr %s304, 32
        %s306 = scalar_lea.vmem [#allocation2], %s305
        // Predicated region
        $region33: #{tpu_custom_call.1} parent=31 // pred_check
          %p307 = pneg %p103
        $region34: #{tpu_custom_call.1} parent=31 // pred_check_branch
          %309 = sbr.rel (%p307) target = $region36
        $region35: #{tpu_custom_call.1} parent=31 // pred_region
          %s310 = smul.u32 4, %s17
          %s312 = ssub.s32 512, 512
          %313 = vsyncadd %s303, %s312
          %s314 = smul.addr %s310, 128
          %s315 = scalar_lea.hbm %s3, %s314
          %s316 = sshll.u32 %s306, 4
          %s317 = int_to_ptr.vmem [resolvable:$true] %s316
          %322 = dma.vmem_to_hbm [thread:$0]  %s317, 512, %s315, %s303, 128, 128, 8
        $region36: #{tpu_custom_call.1} parent=31 // pred_fallthru
          _
      $region32: #{tpu_custom_call.1} parent=5 // pred_fallthru
        _
      %p323 = scmp.le.s32.totalorder 2, %s12
      // Predicated region
      $region37: #{tpu_custom_call.1} parent=5 // pred_check
        %p324 = pneg %p323
      $region38: #{tpu_custom_call.1} parent=5 // pred_check_branch
        %326 = sbr.rel (%p324) target = $region40
      $region39: #{tpu_custom_call.1} parent=5 // pred_region
        %s327 = ssub.s32 %s12, 2
        // Predicated region
        $region41: #{tpu_custom_call.1} parent=39 // pred_check
          %p328 = pneg %p109
        $region42: #{tpu_custom_call.1} parent=39 // pred_check_branch
          %330 = sbr.rel (%p328) target = $region44
        $region43: #{tpu_custom_call.1} parent=39 // pred_region
          %s331 = sand.u32 %s94, 1
          %s332 = scalar_lea.sflag [#allocation3], %s331
          %s333 = sand.u32 %s94, 1
          %s334 = smul.addr %s333, 32
          %s335 = scalar_lea.vmem [#allocation2], %s334
          %336 = dma.done %s332, 512
        $region44: #{tpu_custom_call.1} parent=39 // pred_fallthru
          _
      $region40: #{tpu_custom_call.1} parent=5 // pred_fallthru
        _
    $region6: #{tpu_custom_call.1} parent=1 // loop_footer
      %s16 = sadd.s32 1, %s12
    $region7: #{tpu_custom_call.1} parent=1 // loop_footer_branch
      %11 = sbr.rel target = $region3
    $region8: #{tpu_custom_call.1} parent=1 // loop_exit
      _
    %337 = vsyncpa [#allocation3], 1
    %s338 = scalar_lea.sflag [#allocation3], 1
    %339 = vsyncpa %s338, 1

</llo_original>
